<compile_context>
chip_gen: v5e
topology: v5e:2x2
jax: 0.10.0
libtpu: 0.0.40
codegen_flags: <defaults>
</compile_context>

<pallas_src>
import jax
import jax.numpy as jnp
from jax.experimental import pallas as pl
from jax.experimental.pallas import tpu as pltpu

_LANE = 128
_NEG_INF = -1e9
_FUSED_MAX_NODES = 1024       # n_pad threshold for the single fused call


def _round_up(x, m):
    return (x + m - 1) // m * m


def _vmem_capacity_bytes():
    try:
        info = pltpu.get_tpu_info()
        cap = int(getattr(info, "vmem_capacity_bytes", 0))
        if cap > 0:
            return cap
    except Exception:
        pass
    return 64 << 20            # conservative fallback: v7x per-TC VMEM


def _vmem_limit_bytes():
    # 128 MiB parts (v5e/v6e): allow large streaming tiles.  64 MiB (v7x): <=48 MiB.
    return (96 << 20) if _vmem_capacity_bytes() >= (128 << 20) else (48 << 20)


def _compiler_params(semantics=None):
    return pltpu.CompilerParams(dimension_semantics=semantics,
                                vmem_limit_bytes=_vmem_limit_bytes())


# ---------------------------------------------------------------------------
# Kernels
# ---------------------------------------------------------------------------

def _fused_gcn_kernel(a_ref, x_ref, w0_ref, b0_ref, w2_ref, b2_ref,
                      wl_ref, bl_ref, o_ref):
    """Whole-graph fused forward (small graphs, everything resident in VMEM)."""
    a = a_ref[...]
    xw0 = jnp.dot(x_ref[...], w0_ref[...], preferred_element_type=jnp.float32)
    h = jnp.maximum(
        jnp.dot(a, xw0.astype(a.dtype), preferred_element_type=jnp.float32)
        + b0_ref[...], 0.0)
    xw2 = jnp.dot(h.astype(w2_ref.dtype), w2_ref[...],
                  preferred_element_type=jnp.float32)
    h2 = jnp.maximum(
        jnp.dot(a, xw2.astype(a.dtype), preferred_element_type=jnp.float32)
        + b2_ref[...], 0.0)
    z = jnp.dot(h2.astype(wl_ref.dtype), wl_ref[...],
                preferred_element_type=jnp.float32) + bl_ref[...]
    zmax = jnp.max(z, axis=1, keepdims=True)
    lse = jnp.log(jnp.sum(jnp.exp(z - zmax), axis=1, keepdims=True)) + zmax
    o_ref[...] = (z - lse).astype(o_ref.dtype)


def _xw_kernel(x_ref, w_ref, o_ref):
    """o = x_row_tile @ W  (feature transform, W resident)."""
    o_ref[...] = jnp.dot(x_ref[...], w_ref[...],
                         preferred_element_type=jnp.float32).astype(o_ref.dtype)


def _agg_relu_matmul_kernel(a_ref, xw_ref, b_ref, wn_ref, o_ref):
    """o_row_tile = relu(A_row_stripe @ XW + b) @ W_next.  XW resident in VMEM."""
    acc = jnp.dot(a_ref[...], xw_ref[...], preferred_element_type=jnp.float32)
    h = jnp.maximum(acc + b_ref[...], 0.0)                 # f32 epilogue
    o_ref[...] = jnp.dot(h.astype(wn_ref.dtype), wn_ref[...],
                         preferred_element_type=jnp.float32).astype(o_ref.dtype)


def _agg_relu_head_kernel(a_ref, xw_ref, b_ref, wl_ref, bl_ref, o_ref):
    """o_row_tile = log_softmax(relu(A_row_stripe @ XW + b) @ Wl + bl).  f32 math."""
    acc = jnp.dot(a_ref[...], xw_ref[...], preferred_element_type=jnp.float32)
    h = jnp.maximum(acc + b_ref[...], 0.0)
    z = jnp.dot(h.astype(wl_ref.dtype), wl_ref[...],
                preferred_element_type=jnp.float32) + bl_ref[...]
    zmax = jnp.max(z, axis=1, keepdims=True)
    lse = jnp.log(jnp.sum(jnp.exp(z - zmax), axis=1, keepdims=True)) + zmax
    o_ref[...] = (z - lse).astype(o_ref.dtype)


# ---------------------------------------------------------------------------
# Tile selection
# ---------------------------------------------------------------------------

def _agg_row_tile(n_pad, h_pad, budget):
    """Row-tile for the aggregation stages: largest (512..128) divisor of n_pad
    whose double-buffered A stripe + resident XW/weights fit the VMEM budget.
    Prefer an even tile count so both v7x TensorCores get work."""
    def fits(tm):
        need = (2 * tm * n_pad * 2          # double-buffered bf16 A row stripe
                + 2 * n_pad * h_pad * 2     # resident bf16 XW
                + 2 * h_pad * h_pad * 2     # resident next-layer weight
                + 2 * tm * h_pad * 4        # f32 epilogue temps + output buffers
                + (4 << 20))                # headroom
        return need <= budget
    for require_even in (True, False):
        for tm in (512, 384, 256, 128):
            if n_pad % tm:
                continue
            count = n_pad // tm
            if count < 2 and n_pad != 128:
                continue
            if require_even and count % 2:
                continue
            if fits(tm):
                return tm
    return 128


def _xw_row_tile(n_pad, f_pad, h_pad, budget):
    """Row-tile for the X @ W0 stage, decoupled from the aggregation tiling."""
    for tm in (1024, 512, 384, 256, 128):
        if n_pad % tm:
            continue
        need = (2 * tm * f_pad * 2 + 2 * f_pad * h_pad * 2
                + 2 * tm * h_pad * 2 + (4 << 20))
        if need <= budget:
            return tm
    return 128


# ---------------------------------------------------------------------------
# pallas_call wrappers
# ---------------------------------------------------------------------------

def _fused_forward(a_p, x_p, w0_p, b0_p, w2_p, b2_p, wl_p, bl_p):
    n_pad = a_p.shape[0]
    c_pad = wl_p.shape[1]
    return pl.pallas_call(
        _fused_gcn_kernel,
        out_shape=jax.ShapeDtypeStruct((n_pad, c_pad), jnp.float32),
        compiler_params=_compiler_params(),
    )(a_p, x_p, w0_p, b0_p, w2_p, b2_p, wl_p, bl_p)


def _xw_matmul(x, w, tm):
    n_pad, f_pad = x.shape
    h_pad = w.shape[1]
    return pl.pallas_call(
        _xw_kernel,
        out_shape=jax.ShapeDtypeStruct((n_pad, h_pad), jnp.bfloat16),
        grid_spec=pltpu.PrefetchScalarGridSpec(
            num_scalar_prefetch=0,
            grid=(n_pad // tm,),
            in_specs=[
                pl.BlockSpec((tm, f_pad), lambda i: (i, 0)),
                pl.BlockSpec((f_pad, h_pad), lambda i: (0, 0)),
            ],
            out_specs=pl.BlockSpec((tm, h_pad), lambda i: (i, 0)),
        ),
        compiler_params=_compiler_params(("parallel",)),
    )(x, w)


def _gcn_aggregate(a, xw, b, w_next, tm):
    """relu(A @ XW + b) @ W_next, bf16 output.  Single (row) grid axis; XW resident."""
    n_pad = a.shape[0]
    h_pad = xw.shape[1]
    n_out = w_next.shape[1]
    return pl.pallas_call(
        _agg_relu_matmul_kernel,
        out_shape=jax.ShapeDtypeStruct((n_pad, n_out), jnp.bfloat16),
        grid_spec=pltpu.PrefetchScalarGridSpec(
            num_scalar_prefetch=0,
            grid=(n_pad // tm,),
            in_specs=[
                pl.BlockSpec((tm, n_pad), lambda i: (i, 0)),     # A row stripe
                pl.BlockSpec((n_pad, h_pad), lambda i: (0, 0)),  # resident XW
                pl.BlockSpec((1, h_pad), lambda i: (0, 0)),      # bias (f32)
                pl.BlockSpec((h_pad, n_out), lambda i: (0, 0)),  # next weight
            ],
            out_specs=pl.BlockSpec((tm, n_out), lambda i: (i, 0)),
        ),
        compiler_params=_compiler_params(("parallel",)),
    )(a, xw, b, w_next)


def _gcn_head(a, xw, b, wl, bl, tm):
    """log_softmax(relu(A @ XW + b) @ Wl + bl), f32 output.  XW resident."""
    n_pad = a.shape[0]
    h_pad = xw.shape[1]
    c_pad = wl.shape[1]
    return pl.pallas_call(
        _agg_relu_head_kernel,
        out_shape=jax.ShapeDtypeStruct((n_pad, c_pad), jnp.float32),
        grid_spec=pltpu.PrefetchScalarGridSpec(
            num_scalar_prefetch=0,
            grid=(n_pad // tm,),
            in_specs=[
                pl.BlockSpec((tm, n_pad), lambda i: (i, 0)),
                pl.BlockSpec((n_pad, h_pad), lambda i: (0, 0)),
                pl.BlockSpec((1, h_pad), lambda i: (0, 0)),
                pl.BlockSpec((h_pad, c_pad), lambda i: (0, 0)),
                pl.BlockSpec((1, c_pad), lambda i: (0, 0)),
            ],
            out_specs=pl.BlockSpec((tm, c_pad), lambda i: (i, 0)),
        ),
        compiler_params=_compiler_params(("parallel",)),
    )(a, xw, b, wl, bl)


# ---------------------------------------------------------------------------
# Forward pass
# ---------------------------------------------------------------------------

def gcnnet_forward(a_hat, x, w0, b0, w2, b2, wl, bl):
    n, f = x.shape
    hidden = w0.shape[1]
    c = wl.shape[1]

    # Pad only to the 128-lane granule; the tile sizes adapt to n_pad (never the
    # other way around -- A is O(N^2) so padding it to a tile size is quadratic waste).
    n_pad = _round_up(n, _LANE)
    f_pad = _round_up(f, _LANE)
    h_pad = _round_up(hidden, _LANE)
    c_pad = _round_up(c, _LANE)

    bf = jnp.bfloat16
    # bf16 matmul operands (A_hat is the dominant HBM stream); f32 accumulation and
    # f32 epilogues in-kernel.  Zero padding is exact for every stage; padded class
    # columns get a -1e9 bias so the f32 log_softmax ignores them (do not move the
    # head's softmax math to bf16 without revisiting that).
    a_p = jnp.zeros((n_pad, n_pad), bf).at[:n, :n].set(a_hat.astype(bf))
    x_p = jnp.zeros((n_pad, f_pad), bf).at[:n, :f].set(x.astype(bf))
    w0_p = jnp.zeros((f_pad, h_pad), bf).at[:f, :hidden].set(w0.astype(bf))
    w2_p = jnp.zeros((h_pad, h_pad), bf).at[:hidden, :hidden].set(w2.astype(bf))
    wl_p = jnp.zeros((h_pad, c_pad), bf).at[:hidden, :c].set(wl.astype(bf))
    b0_p = jnp.zeros((1, h_pad), jnp.float32).at[:, :hidden].set(
        b0.reshape(1, -1).astype(jnp.float32))
    b2_p = jnp.zeros((1, h_pad), jnp.float32).at[:, :hidden].set(
        b2.reshape(1, -1).astype(jnp.float32))
    bl_p = jnp.full((1, c_pad), _NEG_INF, jnp.float32).at[:, :c].set(
        bl.reshape(1, -1).astype(jnp.float32))

    if n_pad <= _FUSED_MAX_NODES:
        # Small-graph path: one pallas_call, zero intermediate HBM traffic.
        out = _fused_forward(a_p, x_p, w0_p, b0_p, w2_p, b2_p, wl_p, bl_p)
    else:
        budget = _vmem_limit_bytes() - (8 << 20)
        tm = _agg_row_tile(n_pad, h_pad, budget)
        xw_tm = _xw_row_tile(n_pad, f_pad, h_pad, budget)
        xw0 = _xw_matmul(x_p, w0_p, xw_tm)                   # X @ W0
        xw2 = _gcn_aggregate(a_p, xw0, b0_p, w2_p, tm)       # relu(A@XW0+b0) @ W2
        out = _gcn_head(a_p, xw2, b2_p, wl_p, bl_p, tm)      # log_softmax(relu(A@XW2+b2)@Wl+bl)
    return out[:n, :c]


def gcnnet_reference(a_hat, x, w0, b0, w2, b2, wl, bl):
    """Pure-JAX f32 reference of the same forward pass."""
    h = jnp.maximum(a_hat @ (x @ w0) + b0, 0.0)
    h = jnp.maximum(a_hat @ (h @ w2) + b2, 0.0)
    z = h @ wl + bl
    return jax.nn.log_softmax(z, axis=1)


def build_norm_adj(edge_index, edge_weight, num_nodes):
    """Dense equivalent of PyG gcn_norm with add_self_loops=True.

    A[i, j] = weight of edge j -> i (edge_index = [src, dst]),
    deg[i]  = weighted in-degree (incl. self-loop weight 1),
    A_hat   = D^-1/2 (A + I) D^-1/2.
    """
    src, dst = edge_index[0], edge_index[1]
    a = jnp.zeros((num_nodes, num_nodes), jnp.float32)
    a = a.at[dst, src].add(edge_weight.astype(jnp.float32))
    a = a + jnp.eye(num_nodes, dtype=jnp.float32)
    deg = jnp.sum(a, axis=1)
    d_inv_sqrt = jnp.where(deg > 0, 1.0 / jnp.sqrt(deg), 0.0)
    return d_inv_sqrt[:, None] * a * d_inv_sqrt[None, :]


def _run_case(key, num_nodes, num_feature, hidden, num_class, num_edges, tol):
    (k_x, k_ei, k_ew, k_w0, k_b0, k_w2, k_b2, k_wl, k_bl) = jax.random.split(key, 9)

    x = jax.random.normal(k_x, (num_nodes, num_feature), dtype=jnp.float32)
    edge_index = jax.random.randint(k_ei, (2, num_edges), 0, num_nodes)
    edge_weight = jax.random.uniform(k_ew, (num_edges,), dtype=jnp.float32) + 0.1

    w0 = jax.random.normal(k_w0, (num_feature, hidden), dtype=jnp.float32) * 0.1
    b0 = jax.random.normal(k_b0, (1, hidden), dtype=jnp.float32) * 0.1
    w2 = jax.random.normal(k_w2, (hidden, hidden), dtype=jnp.float32) * 0.1
    b2 = jax.random.normal(k_b2, (1, hidden), dtype=jnp.float32) * 0.1
    wl = jax.random.normal(k_wl, (hidden, num_class), dtype=jnp.float32) * 0.1
    bl = jax.random.normal(k_bl, (1, num_class), dtype=jnp.float32) * 0.1

    a_hat = build_norm_adj(edge_index, edge_weight, num_nodes)

    out = gcnnet_forward(a_hat, x, w0, b0, w2, b2, wl, bl)
    out = jax.block_until_ready(out)

    ref = gcnnet_reference(a_hat, x, w0, b0, w2, b2, wl, bl)
    row_sums = jnp.sum(jnp.exp(out), axis=1)
    assert out.shape == (num_nodes, num_class)
    assert bool(jnp.all(jnp.isfinite(out)))
    assert bool(jnp.all(jnp.abs(row_sums - 1.0) < 1e-4))
    assert float(jnp.max(jnp.abs(out - ref))) < tol
    return out


if __name__ == "__main__":
    key = jax.random.PRNGKey(0)
    k_small, k_large = jax.random.split(key)

    # Small graph (module-default-ish shapes) -> fused single-call path.
    _run_case(k_small, num_nodes=32, num_feature=16, hidden=64, num_class=8,
              num_edges=64, tol=0.1)

    # Larger graph -> tiled 3-kernel path (resident XW, row-striped A).
    _run_case(k_large, num_nodes=1100, num_feature=16, hidden=64, num_class=8,
              num_edges=4400, tol=0.15)

    print("KERNEL_OK")
</pallas_src>

<mosaic_0001>
module attributes {stable_mosaic.version = 11 : i64} {
  func.func @_fused_gcn_kernel(%arg0: memref<128x128xbf16, #tpu.memory_space<vmem>>, %arg1: memref<128x128xbf16, #tpu.memory_space<vmem>>, %arg2: memref<128x128xbf16, #tpu.memory_space<vmem>>, %arg3: memref<1x128xf32, #tpu.memory_space<vmem>>, %arg4: memref<128x128xbf16, #tpu.memory_space<vmem>>, %arg5: memref<1x128xf32, #tpu.memory_space<vmem>>, %arg6: memref<128x128xbf16, #tpu.memory_space<vmem>>, %arg7: memref<1x128xf32, #tpu.memory_space<vmem>>, %arg8: memref<128x128xf32, #tpu.memory_space<vmem>>) attributes {dimension_semantics = [], scalar_prefetch = 0 : i64, scratch_operands = 0 : i64, tpu.core_type = #tpu.core_type<tc>} {
    %c0 = arith.constant 0 : index
    %c0_0 = arith.constant 0 : index
    %0 = vector.load %arg0[%c0, %c0_0] : memref<128x128xbf16, #tpu.memory_space<vmem>>, vector<128x128xbf16>
    %c0_1 = arith.constant 0 : index
    %c0_2 = arith.constant 0 : index
    %1 = vector.load %arg1[%c0_1, %c0_2] : memref<128x128xbf16, #tpu.memory_space<vmem>>, vector<128x128xbf16>
    %c0_3 = arith.constant 0 : index
    %c0_4 = arith.constant 0 : index
    %2 = vector.load %arg2[%c0_3, %c0_4] : memref<128x128xbf16, #tpu.memory_space<vmem>>, vector<128x128xbf16>
    %cst = arith.constant dense<0.000000e+00> : vector<128x128xf32>
    %3 = tpu.matmul %1, %2, %cst {dimension_numbers = #tpu.dot_dimension_numbers<[1], [0], [0], [1], [0, 0, 1, 1], [], []>} : vector<128x128xbf16>, vector<128x128xbf16>, vector<128x128xf32> -> vector<128x128xf32>
    %4 = arith.truncf %3 : vector<128x128xf32> to vector<128x128xbf16>
    %cst_5 = arith.constant dense<0.000000e+00> : vector<128x128xf32>
    %5 = tpu.matmul %0, %4, %cst_5 {dimension_numbers = #tpu.dot_dimension_numbers<[1], [0], [0], [1], [0, 0, 1, 1], [], []>} : vector<128x128xbf16>, vector<128x128xbf16>, vector<128x128xf32> -> vector<128x128xf32>
    %c0_6 = arith.constant 0 : index
    %c0_7 = arith.constant 0 : index
    %6 = vector.load %arg3[%c0_6, %c0_7] : memref<1x128xf32, #tpu.memory_space<vmem>>, vector<1x128xf32>
    %7 = vector.broadcast %6 : vector<1x128xf32> to vector<128x128xf32>
    %8 = arith.addf %5, %7 : vector<128x128xf32>
    %cst_8 = arith.constant 0.000000e+00 : f32
    %9 = vector.broadcast %cst_8 : f32 to vector<128x128xf32>
    %10 = arith.maximumf %8, %9 : vector<128x128xf32>
    %11 = arith.truncf %10 : vector<128x128xf32> to vector<128x128xbf16>
    %c0_9 = arith.constant 0 : index
    %c0_10 = arith.constant 0 : index
    %12 = vector.load %arg4[%c0_9, %c0_10] : memref<128x128xbf16, #tpu.memory_space<vmem>>, vector<128x128xbf16>
    %cst_11 = arith.constant dense<0.000000e+00> : vector<128x128xf32>
    %13 = tpu.matmul %11, %12, %cst_11 {dimension_numbers = #tpu.dot_dimension_numbers<[1], [0], [0], [1], [0, 0, 1, 1], [], []>} : vector<128x128xbf16>, vector<128x128xbf16>, vector<128x128xf32> -> vector<128x128xf32>
    %14 = arith.truncf %13 : vector<128x128xf32> to vector<128x128xbf16>
    %cst_12 = arith.constant dense<0.000000e+00> : vector<128x128xf32>
    %15 = tpu.matmul %0, %14, %cst_12 {dimension_numbers = #tpu.dot_dimension_numbers<[1], [0], [0], [1], [0, 0, 1, 1], [], []>} : vector<128x128xbf16>, vector<128x128xbf16>, vector<128x128xf32> -> vector<128x128xf32>
    %c0_13 = arith.constant 0 : index
    %c0_14 = arith.constant 0 : index
    %16 = vector.load %arg5[%c0_13, %c0_14] : memref<1x128xf32, #tpu.memory_space<vmem>>, vector<1x128xf32>
    %17 = vector.broadcast %16 : vector<1x128xf32> to vector<128x128xf32>
    %18 = arith.addf %15, %17 : vector<128x128xf32>
    %cst_15 = arith.constant 0.000000e+00 : f32
    %19 = vector.broadcast %cst_15 : f32 to vector<128x128xf32>
    %20 = arith.maximumf %18, %19 : vector<128x128xf32>
    %21 = arith.truncf %20 : vector<128x128xf32> to vector<128x128xbf16>
    %c0_16 = arith.constant 0 : index
    %c0_17 = arith.constant 0 : index
    %22 = vector.load %arg6[%c0_16, %c0_17] : memref<128x128xbf16, #tpu.memory_space<vmem>>, vector<128x128xbf16>
    %cst_18 = arith.constant dense<0.000000e+00> : vector<128x128xf32>
    %23 = tpu.matmul %21, %22, %cst_18 {dimension_numbers = #tpu.dot_dimension_numbers<[1], [0], [0], [1], [0, 0, 1, 1], [], []>} : vector<128x128xbf16>, vector<128x128xbf16>, vector<128x128xf32> -> vector<128x128xf32>
    %c0_19 = arith.constant 0 : index
    %c0_20 = arith.constant 0 : index
    %24 = vector.load %arg7[%c0_19, %c0_20] : memref<1x128xf32, #tpu.memory_space<vmem>>, vector<1x128xf32>
    %25 = vector.broadcast %24 : vector<1x128xf32> to vector<128x128xf32>
    %26 = arith.addf %23, %25 : vector<128x128xf32>
    %cst_21 = arith.constant dense<0xFF800000> : vector<128xf32>
    %27 = vector.multi_reduction <maximumf>, %26, %cst_21 [1] : vector<128x128xf32> to vector<128xf32>
    %28 = vector.shape_cast %27 : vector<128xf32> to vector<128x1xf32>
    %29 = vector.broadcast %28 : vector<128x1xf32> to vector<128x128xf32>
    %30 = arith.subf %26, %29 : vector<128x128xf32>
    %31 = math.exp %30 : vector<128x128xf32>
    %cst_22 = arith.constant dense<0.000000e+00> : vector<128xf32>
    %32 = vector.multi_reduction <add>, %31, %cst_22 [1] : vector<128x128xf32> to vector<128xf32>
    %33 = vector.shape_cast %32 : vector<128xf32> to vector<128x1xf32>
    %34 = math.log %33 : vector<128x1xf32>
    %35 = arith.addf %34, %28 : vector<128x1xf32>
    %36 = vector.broadcast %35 : vector<128x1xf32> to vector<128x128xf32>
    %37 = arith.subf %26, %36 : vector<128x128xf32>
    %c0_23 = arith.constant 0 : index
    %c0_24 = arith.constant 0 : index
    %38 = vector.load %arg8[%c0_23, %c0_24] : memref<128x128xf32, #tpu.memory_space<vmem>>, vector<128x128xf32>
    tpu.vector_store %arg8[%c0_23, %c0_24], %37 {strides = array<i32>} : memref<128x128xf32, #tpu.memory_space<vmem>>, vector<128x128xf32>,
    return
  }
}

</mosaic_0001>

<llo_original>
// kernel: tpu_custom_call.1
$region0: #{tpu_custom_call.1}
  #allocation0 [shape = 'u32[]', space=smem, size = 0x4, offset = 0x4, fixed_abs, tag = 'smem constant byte address 0x4 - core index']
  #allocation1 [shape = 'u32[72,128]{1,0:T(1,128)}', space=vmem, size = 0x9000, scoped, tag = 'internal scratch']
  %s0 = inlined_call_operand.hbm [shape: bf16[128,128], index: 0, kind: input, shape index: {}]
  %s1 = inlined_call_operand.hbm [shape: bf16[128,128], index: 1, kind: input, shape index: {}]
  %s2 = inlined_call_operand.hbm [shape: bf16[128,128], index: 2, kind: input, shape index: {}]
  %s3 = inlined_call_operand.vmem [shape: f32[1,128], index: 3, kind: input, shape index: {}]
  %s4 = inlined_call_operand.hbm [shape: bf16[128,128], index: 4, kind: input, shape index: {}]
  %s5 = inlined_call_operand.vmem [shape: f32[1,128], index: 5, kind: input, shape index: {}]
  %s6 = inlined_call_operand.hbm [shape: bf16[128,128], index: 6, kind: input, shape index: {}]
  %s7 = inlined_call_operand.vmem [shape: f32[1,128], index: 7, kind: input, shape index: {}]
  %s8 = inlined_call_operand.hbm [shape: f32[128,128], index: 8, kind: output, shape index: {}]
  %s9 = sld [smem:[#allocation0]]
  $region62: #{tpu_custom_call.1} parent=0
    _
  %s11 = ssub.s32 1, %s9
  %s12 = scalar_select 0, %s11, %s9
  $region1: #{tpu_custom_call.1} parent=0
    #allocation2 [shape = 'u8[32768]{0}', space=vmem, size = 0x8000, scoped, tag = 'input window, operand 0, single buffered']
    #allocation3 [shape = 's32[1]{0}', space=sflag, size = 0x4, scoped, tag = 'scoped memory for tpu_custom_call.1']
    #allocation4 [shape = 's32[1]{0}', space=sflag, size = 0x4, scoped, tag = 'scoped memory for tpu_custom_call.1']
    #allocation5 [shape = 'u8[32768]{0}', space=vmem, size = 0x8000, scoped, tag = 'input window, operand 1, single buffered']
    #allocation6 [shape = 's32[1]{0}', space=sflag, size = 0x4, scoped, tag = 'scoped memory for tpu_custom_call.1']
    #allocation7 [shape = 'u8[32768]{0}', space=vmem, size = 0x8000, scoped, tag = 'input window, operand 2, single buffered']
    #allocation8 [shape = 'u8[32768]{0}', space=vmem, size = 0x8000, scoped, tag = 'input window, operand 4, single buffered']
    #allocation9 [shape = 's32[1]{0}', space=sflag, size = 0x4, scoped, tag = 'scoped memory for tpu_custom_call.1']
    #allocation10 [shape = 'u8[32768]{0}', space=vmem, size = 0x8000, scoped, tag = 'input window, operand 6, single buffered']
    #allocation11 [shape = 'u8[65536]{0}', space=vmem, size = 0x10000, scoped, tag = 'output window, operand 0, single buffered']
    %13 = vsyncpa [#allocation3], 0
    %14 = vsyncpa [#allocation6], 0
    %15 = vsyncpa [#allocation9], 0
    %16 = vsyncpa [#allocation4], 0
    // Predicated region
    $region2: #{tpu_custom_call.1} parent=1 // pred_check
      _
    $region3: #{tpu_custom_call.1} parent=1 // pred_check_branch
      %18 = sbr.rel (0) target = $region5
    $region4: #{tpu_custom_call.1} parent=1 // pred_region
      %20 = vsyncadd [#allocation3], 0
      %s21 = sshll.u32 %s0, 4
      %s22 = int_to_ptr.hbm [resolvable:$true] %s21
      %s23 = sshll.u32 [#allocation2], 4
      %s24 = int_to_ptr.vmem [resolvable:$true] %s23
      %29 = dma.hbm_to_vmem [thread:$0]  %s22, 1024, %s24, [#allocation3], 64, 64, 4
    $region5: #{tpu_custom_call.1} parent=1 // pred_fallthru
      _
    // Predicated region
    $region6: #{tpu_custom_call.1} parent=1 // pred_check
      _
    $region7: #{tpu_custom_call.1} parent=1 // pred_check_branch
      %31 = sbr.rel (0) target = $region9
    $region8: #{tpu_custom_call.1} parent=1 // pred_region
      %33 = vsyncadd [#allocation6], 0
      %s34 = sshll.u32 %s1, 4
      %s35 = int_to_ptr.hbm [resolvable:$true] %s34
      %s36 = sshll.u32 [#allocation5], 4
      %s37 = int_to_ptr.vmem [resolvable:$true] %s36
      %42 = dma.hbm_to_vmem [thread:$0]  %s35, 1024, %s37, [#allocation6], 64, 64, 4
    $region9: #{tpu_custom_call.1} parent=1 // pred_fallthru
      _
    // Predicated region
    $region10: #{tpu_custom_call.1} parent=1 // pred_check
      _
    $region11: #{tpu_custom_call.1} parent=1 // pred_check_branch
      %44 = sbr.rel (0) target = $region13
    $region12: #{tpu_custom_call.1} parent=1 // pred_region
      %46 = vsyncadd [#allocation6], 0
      %s47 = sshll.u32 %s2, 4
      %s48 = int_to_ptr.hbm [resolvable:$true] %s47
      %s49 = sshll.u32 [#allocation7], 4
      %s50 = int_to_ptr.vmem [resolvable:$true] %s49
      %55 = dma.hbm_to_vmem [thread:$0]  %s48, 1024, %s50, [#allocation6], 64, 64, 4
    $region13: #{tpu_custom_call.1} parent=1 // pred_fallthru
      _
    // Predicated region
    $region14: #{tpu_custom_call.1} parent=1 // pred_check
      _
    $region15: #{tpu_custom_call.1} parent=1 // pred_check_branch
      %57 = sbr.rel (0) target = $region17
    $region16: #{tpu_custom_call.1} parent=1 // pred_region
      _
    $region17: #{tpu_custom_call.1} parent=1 // pred_fallthru
      _
    // Predicated region
    $region18: #{tpu_custom_call.1} parent=1 // pred_check
      _
    $region19: #{tpu_custom_call.1} parent=1 // pred_check_branch
      %59 = sbr.rel (0) target = $region21
    $region20: #{tpu_custom_call.1} parent=1 // pred_region
      %61 = vsyncadd [#allocation9], 0
      %s62 = sshll.u32 %s4, 4
      %s63 = int_to_ptr.hbm [resolvable:$true] %s62
      %s64 = sshll.u32 [#allocation8], 4
      %s65 = int_to_ptr.vmem [resolvable:$true] %s64
      %70 = dma.hbm_to_vmem [thread:$0]  %s63, 1024, %s65, [#allocation9], 64, 64, 4
    $region21: #{tpu_custom_call.1} parent=1 // pred_fallthru
      _
    // Predicated region
    $region22: #{tpu_custom_call.1} parent=1 // pred_check
      _
    $region23: #{tpu_custom_call.1} parent=1 // pred_check_branch
      %72 = sbr.rel (0) target = $region25
    $region24: #{tpu_custom_call.1} parent=1 // pred_region
      _
    $region25: #{tpu_custom_call.1} parent=1 // pred_fallthru
      _
    // Predicated region
    $region26: #{tpu_custom_call.1} parent=1 // pred_check
      _
    $region27: #{tpu_custom_call.1} parent=1 // pred_check_branch
      %74 = sbr.rel (0) target = $region29
    $region28: #{tpu_custom_call.1} parent=1 // pred_region
      %76 = vsyncadd [#allocation9], 0
      %s77 = sshll.u32 %s6, 4
      %s78 = int_to_ptr.hbm [resolvable:$true] %s77
      %s79 = sshll.u32 [#allocation10], 4
      %s80 = int_to_ptr.vmem [resolvable:$true] %s79
      %85 = dma.hbm_to_vmem [thread:$0]  %s78, 1024, %s80, [#allocation9], 64, 64, 4
    $region29: #{tpu_custom_call.1} parent=1 // pred_fallthru
      _
    // Predicated region
    $region30: #{tpu_custom_call.1} parent=1 // pred_check
      _
    $region31: #{tpu_custom_call.1} parent=1 // pred_check_branch
      %87 = sbr.rel (0) target = $region33
    $region32: #{tpu_custom_call.1} parent=1 // pred_region
      _
    $region33: #{tpu_custom_call.1} parent=1 // pred_fallthru
      _
    // Predicated region
    $region34: #{tpu_custom_call.1} parent=1 // pred_check
      _
    $region35: #{tpu_custom_call.1} parent=1 // pred_check_branch
      %89 = sbr.rel (0) target = $region37
    $region36: #{tpu_custom_call.1} parent=1 // pred_region
      %91 = dma.done [#allocation3], 1024
    $region37: #{tpu_custom_call.1} parent=1 // pred_fallthru
      _
    // Predicated region
    $region38: #{tpu_custom_call.1} parent=1 // pred_check
      _
    $region39: #{tpu_custom_call.1} parent=1 // pred_check_branch
      %93 = sbr.rel (0) target = $region41
    $region40: #{tpu_custom_call.1} parent=1 // pred_region
      %95 = dma.done [#allocation6], 1024
    $region41: #{tpu_custom_call.1} parent=1 // pred_fallthru
      _
    // Predicated region
    $region42: #{tpu_custom_call.1} parent=1 // pred_check
      _
    $region43: #{tpu_custom_call.1} parent=1 // pred_check_branch
      %97 = sbr.rel (0) target = $region45
    $region44: #{tpu_custom_call.1} parent=1 // pred_region
      %99 = dma.done [#allocation6], 1024
    $region45: #{tpu_custom_call.1} parent=1 // pred_fallthru
      _
    // Predicated region
    $region46: #{tpu_custom_call.1} parent=1 // pred_check
      _
    $region47: #{tpu_custom_call.1} parent=1 // pred_check_branch
      %101 = sbr.rel (0) target = $region49
    $region48: #{tpu_custom_call.1} parent=1 // pred_region
      %103 = dma.done [#allocation9], 1024
    $region49: #{tpu_custom_call.1} parent=1 // pred_fallthru
      _
    // Predicated region
    $region50: #{tpu_custom_call.1} parent=1 // pred_check
      _
    $region51: #{tpu_custom_call.1} parent=1 // pred_check_branch
      %105 = sbr.rel (0) target = $region53
    $region52: #{tpu_custom_call.1} parent=1 // pred_region
      %107 = dma.done [#allocation9], 1024
    $region53: #{tpu_custom_call.1} parent=1 // pred_fallthru
      _
    %v108 = vld [vmem:[#allocation2] sm:$0xf]
    %v109 = vld [vmem:[#allocation2 + $0x4] sm:$0xf]
    %v110 = vld [vmem:[#allocation2 + $0x8] sm:$0xf]
    %v111 = vld [vmem:[#allocation2 + $0xc] sm:$0xf]
    %v112 = vld [vmem:[#allocation2 + $0x10] sm:$0xf]
    %v113 = vld [vmem:[#allocation2 + $0x14] sm:$0xf]
    %v114 = vld [vmem:[#allocation2 + $0x18] sm:$0xf]
    %v115 = vld [vmem:[#allocation2 + $0x1c] sm:$0xf]
    %v116 = vld [vmem:[#allocation2 + $0x20] sm:$0xf]
    %v117 = vld [vmem:[#allocation2 + $0x24] sm:$0xf]
    %v118 = vld [vmem:[#allocation2 + $0x28] sm:$0xf]
    %v119 = vld [vmem:[#allocation2 + $0x2c] sm:$0xf]
    %v120 = vld [vmem:[#allocation2 + $0x30] sm:$0xf]
    %v121 = vld [vmem:[#allocation2 + $0x34] sm:$0xf]
    %v122 = vld [vmem:[#allocation2 + $0x38] sm:$0xf]
    %v123 = vld [vmem:[#allocation2 + $0x3c] sm:$0xf]
    %v124 = vld [vmem:[#allocation5] sm:$0xf]
    %v125 = vld [vmem:[#allocation5 + $0x4] sm:$0xf]
    %v126 = vld [vmem:[#allocation5 + $0x8] sm:$0xf]
    %v127 = vld [vmem:[#allocation5 + $0xc] sm:$0xf]
    %v128 = vld [vmem:[#allocation5 + $0x10] sm:$0xf]
    %v129 = vld [vmem:[#allocation5 + $0x14] sm:$0xf]
    %v130 = vld [vmem:[#allocation5 + $0x18] sm:$0xf]
    %v131 = vld [vmem:[#allocation5 + $0x1c] sm:$0xf]
    %v132 = vld [vmem:[#allocation5 + $0x20] sm:$0xf]
    %v133 = vld [vmem:[#allocation5 + $0x24] sm:$0xf]
    %v134 = vld [vmem:[#allocation5 + $0x28] sm:$0xf]
    %v135 = vld [vmem:[#allocation5 + $0x2c] sm:$0xf]
    %v136 = vld [vmem:[#allocation5 + $0x30] sm:$0xf]
    %v137 = vld [vmem:[#allocation5 + $0x34] sm:$0xf]
    %v138 = vld [vmem:[#allocation5 + $0x38] sm:$0xf]
    %v139 = vld [vmem:[#allocation5 + $0x3c] sm:$0xf]
    %v140 = vld [vmem:[#allocation7] sm:$0xf]
    %v141 = vld [vmem:[#allocation7 + $0x4] sm:$0xf]
    %v142 = vld [vmem:[#allocation7 + $0x8] sm:$0xf]
    %v143 = vld [vmem:[#allocation7 + $0xc] sm:$0xf]
    %v144 = vld [vmem:[#allocation7 + $0x10] sm:$0xf]
    %v145 = vld [vmem:[#allocation7 + $0x14] sm:$0xf]
    %v146 = vld [vmem:[#allocation7 + $0x18] sm:$0xf]
    %v147 = vld [vmem:[#allocation7 + $0x1c] sm:$0xf]
    %v148 = vld [vmem:[#allocation7 + $0x20] sm:$0xf]
    %v149 = vld [vmem:[#allocation7 + $0x24] sm:$0xf]
    %v150 = vld [vmem:[#allocation7 + $0x28] sm:$0xf]
    %v151 = vld [vmem:[#allocation7 + $0x2c] sm:$0xf]
    %v152 = vld [vmem:[#allocation7 + $0x30] sm:$0xf]
    %v153 = vld [vmem:[#allocation7 + $0x34] sm:$0xf]
    %v154 = vld [vmem:[#allocation7 + $0x38] sm:$0xf]
    %v155 = vld [vmem:[#allocation7 + $0x3c] sm:$0xf]
    %v172 = vunpack.c.l.b16 %v124
    %v173 = vunpack.c.l.b16 %v125
    %v174 = vunpack.c.l.b16 %v126
    %v175 = vunpack.c.l.b16 %v127
    %v176 = vunpack.c.l.b16 %v128
    %v177 = vunpack.c.l.b16 %v129
    %v178 = vunpack.c.l.b16 %v130
    %v179 = vunpack.c.l.b16 %v131
    %v180 = vunpack.c.l.b16 %v132
    %v181 = vunpack.c.l.b16 %v133
    %v182 = vunpack.c.l.b16 %v134
    %v183 = vunpack.c.l.b16 %v135
    %v184 = vunpack.c.l.b16 %v136
    %v185 = vunpack.c.l.b16 %v137
    %v186 = vunpack.c.l.b16 %v138
    %v187 = vunpack.c.l.b16 %v139
    %v188 = vpack.c.b16 %v173, %v172
    %v189 = vpack.c.b16 %v175, %v174
    %v190 = vpack.c.b16 %v177, %v176
    %v191 = vpack.c.b16 %v179, %v178
    %v192 = vpack.c.b16 %v181, %v180
    %v193 = vpack.c.b16 %v183, %v182
    %v194 = vpack.c.b16 %v185, %v184
    %v195 = vpack.c.b16 %v187, %v186
    %v220 = vunpack.c.l.b16 %v140
    %v221 = vunpack.c.l.b16 %v141
    %v222 = vunpack.c.l.b16 %v142
    %v223 = vunpack.c.l.b16 %v143
    %v224 = vunpack.c.l.b16 %v144
    %v225 = vunpack.c.l.b16 %v145
    %v226 = vunpack.c.l.b16 %v146
    %v227 = vunpack.c.l.b16 %v147
    %v228 = vunpack.c.l.b16 %v148
    %v229 = vunpack.c.l.b16 %v149
    %v230 = vunpack.c.l.b16 %v150
    %v231 = vunpack.c.l.b16 %v151
    %v232 = vunpack.c.l.b16 %v152
    %v233 = vunpack.c.l.b16 %v153
    %v234 = vunpack.c.l.b16 %v154
    %v235 = vunpack.c.l.b16 %v155
    %v236 = vpack.c.b16 %v221, %v220
    %v237 = vpack.c.b16 %v223, %v222
    %v238 = vpack.c.b16 %v225, %v224
    %v239 = vpack.c.b16 %v227, %v226
    %v240 = vpack.c.b16 %v229, %v228
    %v241 = vpack.c.b16 %v231, %v230
    %v242 = vpack.c.b16 %v233, %v232
    %v243 = vpack.c.b16 %v235, %v234
    %252 = vmatpush.bf16.msra.mxu0 %v243
    %253 = vmatpush.bf16.msra.mxu0 %v242
    %254 = vmatpush.bf16.msra.mxu0 %v241
    %255 = vmatpush.bf16.msra.mxu0 %v240
    %256 = vmatpush.bf16.msra.mxu0 %v239
    %257 = vmatpush.bf16.msra.mxu0 %v238
    %258 = vmatpush.bf16.msra.mxu0 %v237
    %259 = vmatpush.bf16.msra.mxu0 %v236
    %260 = vmatmul.bf16.gmra.mxu0 %v188
    %v261 = vpop.f32.mrf.mxu0
    %v262 = vadd.f32 0.0, %v261
    %v263 = vpop.f32.mrf.mxu0
    %v264 = vadd.f32 0.0, %v263
    %265 = vmatmul.bf16.gmra.mxu0 %v189
    %v266 = vpop.f32.mrf.mxu0
    %v267 = vadd.f32 0.0, %v266
    %v268 = vpop.f32.mrf.mxu0
    %v269 = vadd.f32 0.0, %v268
    %270 = vmatmul.bf16.gmra.mxu0 %v190
    %v271 = vpop.f32.mrf.mxu0
    %v272 = vadd.f32 0.0, %v271
    %v273 = vpop.f32.mrf.mxu0
    %v274 = vadd.f32 0.0, %v273
    %275 = vmatmul.bf16.gmra.mxu0 %v191
    %v276 = vpop.f32.mrf.mxu0
    %v277 = vadd.f32 0.0, %v276
    %v278 = vpop.f32.mrf.mxu0
    %v279 = vadd.f32 0.0, %v278
    %280 = vmatmul.bf16.gmra.mxu0 %v192
    %v281 = vpop.f32.mrf.mxu0
    %v282 = vadd.f32 0.0, %v281
    %v283 = vpop.f32.mrf.mxu0
    %v284 = vadd.f32 0.0, %v283
    %285 = vmatmul.bf16.gmra.mxu0 %v193
    %v286 = vpop.f32.mrf.mxu0
    %v287 = vadd.f32 0.0, %v286
    %v288 = vpop.f32.mrf.mxu0
    %v289 = vadd.f32 0.0, %v288
    %290 = vmatmul.bf16.gmra.mxu0 %v194
    %v291 = vpop.f32.mrf.mxu0
    %v292 = vadd.f32 0.0, %v291
    %v293 = vpop.f32.mrf.mxu0
    %v294 = vadd.f32 0.0, %v293
    %295 = vmatmul.bf16.gmra.mxu0 %v195
    %v296 = vpop.f32.mrf.mxu0
    %v297 = vadd.f32 0.0, %v296
    %v298 = vpop.f32.mrf.mxu0
    %v299 = vadd.f32 0.0, %v298
    %300 = vdwg.mxu0
    %v301 = vpack.c.bf16 %v264, %v262
    %v302 = vpack.c.bf16 %v269, %v267
    %v303 = vpack.c.bf16 %v274, %v272
    %v304 = vpack.c.bf16 %v279, %v277
    %v305 = vpack.c.bf16 %v284, %v282
    %v306 = vpack.c.bf16 %v289, %v287
    %v307 = vpack.c.bf16 %v294, %v292
    %v308 = vpack.c.bf16 %v299, %v297
    %v309 = vld [vmem:[%s3] sm:$0x1]
    %v311 = vperm.slane %v309, 0
    %v329 = vunpack.c.l.b16 %v108
    %v330 = vunpack.c.l.b16 %v109
    %v331 = vunpack.c.l.b16 %v110
    %v332 = vunpack.c.l.b16 %v111
    %v333 = vunpack.c.l.b16 %v112
    %v334 = vunpack.c.l.b16 %v113
    %v335 = vunpack.c.l.b16 %v114
    %v336 = vunpack.c.l.b16 %v115
    %v337 = vunpack.c.l.b16 %v116
    %v338 = vunpack.c.l.b16 %v117
    %v339 = vunpack.c.l.b16 %v118
    %v340 = vunpack.c.l.b16 %v119
    %v341 = vunpack.c.l.b16 %v120
    %v342 = vunpack.c.l.b16 %v121
    %v343 = vunpack.c.l.b16 %v122
    %v344 = vunpack.c.l.b16 %v123
    %v345 = vpack.c.b16 %v330, %v329
    %v346 = vpack.c.b16 %v332, %v331
    %v347 = vpack.c.b16 %v334, %v333
    %v348 = vpack.c.b16 %v336, %v335
    %v349 = vpack.c.b16 %v338, %v337
    %v350 = vpack.c.b16 %v340, %v339
    %v351 = vpack.c.b16 %v342, %v341
    %v352 = vpack.c.b16 %v344, %v343
    %361 = vmatpush.bf16.msra.mxu0 %v308
    %362 = vmatpush.bf16.msra.mxu0 %v307
    %363 = vmatpush.bf16.msra.mxu0 %v306
    %364 = vmatpush.bf16.msra.mxu0 %v305
    %365 = vmatpush.bf16.msra.mxu0 %v304
    %366 = vmatpush.bf16.msra.mxu0 %v303
    %367 = vmatpush.bf16.msra.mxu0 %v302
    %368 = vmatpush.bf16.msra.mxu0 %v301
    %369 = vmatmul.bf16.gmra.mxu0 %v345
    %v370 = vpop.f32.mrf.mxu0
    %v371 = vadd.f32 %v311, %v370
    %v372 = vpop.f32.mrf.mxu0
    %v373 = vadd.f32 %v311, %v372
    %374 = vmatmul.bf16.gmra.mxu0 %v346
    %v375 = vpop.f32.mrf.mxu0
    %v376 = vadd.f32 %v311, %v375
    %v377 = vpop.f32.mrf.mxu0
    %v378 = vadd.f32 %v311, %v377
    %379 = vmatmul.bf16.gmra.mxu0 %v347
    %v380 = vpop.f32.mrf.mxu0
    %v381 = vadd.f32 %v311, %v380
    %v382 = vpop.f32.mrf.mxu0
    %v383 = vadd.f32 %v311, %v382
    %384 = vmatmul.bf16.gmra.mxu0 %v348
    %v385 = vpop.f32.mrf.mxu0
    %v386 = vadd.f32 %v311, %v385
    %v387 = vpop.f32.mrf.mxu0
    %v388 = vadd.f32 %v311, %v387
    %389 = vmatmul.bf16.gmra.mxu0 %v349
    %v390 = vpop.f32.mrf.mxu0
    %v391 = vadd.f32 %v311, %v390
    %v392 = vpop.f32.mrf.mxu0
    %v393 = vadd.f32 %v311, %v392
    %394 = vmatmul.bf16.gmra.mxu0 %v350
    %v395 = vpop.f32.mrf.mxu0
    %v396 = vadd.f32 %v311, %v395
    %v397 = vpop.f32.mrf.mxu0
    %v398 = vadd.f32 %v311, %v397
    %399 = vmatmul.bf16.gmra.mxu0 %v351
    %v400 = vpop.f32.mrf.mxu0
    %v401 = vadd.f32 %v311, %v400
    %v402 = vpop.f32.mrf.mxu0
    %v403 = vadd.f32 %v311, %v402
    %404 = vmatmul.bf16.gmra.mxu0 %v352
    %v405 = vpop.f32.mrf.mxu0
    %v406 = vadd.f32 %v311, %v405
    %v407 = vpop.f32.mrf.mxu0
    %v408 = vadd.f32 %v311, %v407
    %409 = vdwg.mxu0
    %v410 = vmax.f32 %v371, 0.0
    %v411 = vmax.f32 %v373, 0.0
    %v412 = vmax.f32 %v376, 0.0
    %v413 = vmax.f32 %v378, 0.0
    %v414 = vmax.f32 %v381, 0.0
    %v415 = vmax.f32 %v383, 0.0
    %v416 = vmax.f32 %v386, 0.0
    %v417 = vmax.f32 %v388, 0.0
    %v418 = vmax.f32 %v391, 0.0
    %v419 = vmax.f32 %v393, 0.0
    %v420 = vmax.f32 %v396, 0.0
    %v421 = vmax.f32 %v398, 0.0
    %v422 = vmax.f32 %v401, 0.0
    %v423 = vmax.f32 %v403, 0.0
    %v424 = vmax.f32 %v406, 0.0
    %v425 = vmax.f32 %v408, 0.0
    %v426 = vpack.c.bf16 %v411, %v410
    %v427 = vpack.c.bf16 %v413, %v412
    %v428 = vpack.c.bf16 %v415, %v414
    %v429 = vpack.c.bf16 %v417, %v416
    %v430 = vpack.c.bf16 %v419, %v418
    %v431 = vpack.c.bf16 %v421, %v420
    %v432 = vpack.c.bf16 %v423, %v422
    %v433 = vpack.c.bf16 %v425, %v424
    %v434 = vld [vmem:[#allocation8] sm:$0xf]
    %v435 = vld [vmem:[#allocation8 + $0x4] sm:$0xf]
    %v436 = vld [vmem:[#allocation8 + $0x8] sm:$0xf]
    %v437 = vld [vmem:[#allocation8 + $0xc] sm:$0xf]
    %v438 = vld [vmem:[#allocation8 + $0x10] sm:$0xf]
    %v439 = vld [vmem:[#allocation8 + $0x14] sm:$0xf]
    %v440 = vld [vmem:[#allocation8 + $0x18] sm:$0xf]
    %v441 = vld [vmem:[#allocation8 + $0x1c] sm:$0xf]
    %v442 = vld [vmem:[#allocation8 + $0x20] sm:$0xf]
    %v443 = vld [vmem:[#allocation8 + $0x24] sm:$0xf]
    %v444 = vld [vmem:[#allocation8 + $0x28] sm:$0xf]
    %v445 = vld [vmem:[#allocation8 + $0x2c] sm:$0xf]
    %v446 = vld [vmem:[#allocation8 + $0x30] sm:$0xf]
    %v447 = vld [vmem:[#allocation8 + $0x34] sm:$0xf]
    %v448 = vld [vmem:[#allocation8 + $0x38] sm:$0xf]
    %v449 = vld [vmem:[#allocation8 + $0x3c] sm:$0xf]
    %v466 = vunpack.c.l.b16 %v434
    %v467 = vunpack.c.l.b16 %v435
    %v468 = vunpack.c.l.b16 %v436
    %v469 = vunpack.c.l.b16 %v437
    %v470 = vunpack.c.l.b16 %v438
    %v471 = vunpack.c.l.b16 %v439
    %v472 = vunpack.c.l.b16 %v440
    %v473 = vunpack.c.l.b16 %v441
    %v474 = vunpack.c.l.b16 %v442
    %v475 = vunpack.c.l.b16 %v443
    %v476 = vunpack.c.l.b16 %v444
    %v477 = vunpack.c.l.b16 %v445
    %v478 = vunpack.c.l.b16 %v446
    %v479 = vunpack.c.l.b16 %v447
    %v480 = vunpack.c.l.b16 %v448
    %v481 = vunpack.c.l.b16 %v449
    %v482 = vpack.c.b16 %v467, %v466
    %v483 = vpack.c.b16 %v469, %v468
    %v484 = vpack.c.b16 %v471, %v470
    %v485 = vpack.c.b16 %v473, %v472
    %v486 = vpack.c.b16 %v475, %v474
    %v487 = vpack.c.b16 %v477, %v476
    %v488 = vpack.c.b16 %v479, %v478
    %v489 = vpack.c.b16 %v481, %v480
    %498 = vmatpush.bf16.msra.mxu0 %v489
    %499 = vmatpush.bf16.msra.mxu0 %v488
    %500 = vmatpush.bf16.msra.mxu0 %v487
    %501 = vmatpush.bf16.msra.mxu0 %v486
    %502 = vmatpush.bf16.msra.mxu0 %v485
    %503 = vmatpush.bf16.msra.mxu0 %v484
    %504 = vmatpush.bf16.msra.mxu0 %v483
    %505 = vmatpush.bf16.msra.mxu0 %v482
    %506 = vmatmul.bf16.gmra.mxu0 %v426
    %v507 = vpop.f32.mrf.mxu0
    %v508 = vadd.f32 0.0, %v507
    %v509 = vpop.f32.mrf.mxu0
    %v510 = vadd.f32 0.0, %v509
    %511 = vmatmul.bf16.gmra.mxu0 %v427
    %v512 = vpop.f32.mrf.mxu0
    %v513 = vadd.f32 0.0, %v512
    %v514 = vpop.f32.mrf.mxu0
    %v515 = vadd.f32 0.0, %v514
    %516 = vmatmul.bf16.gmra.mxu0 %v428
    %v517 = vpop.f32.mrf.mxu0
    %v518 = vadd.f32 0.0, %v517
    %v519 = vpop.f32.mrf.mxu0
    %v520 = vadd.f32 0.0, %v519
    %521 = vmatmul.bf16.gmra.mxu0 %v429
    %v522 = vpop.f32.mrf.mxu0
    %v523 = vadd.f32 0.0, %v522
    %v524 = vpop.f32.mrf.mxu0
    %v525 = vadd.f32 0.0, %v524
    %526 = vmatmul.bf16.gmra.mxu0 %v430
    %v527 = vpop.f32.mrf.mxu0
    %v528 = vadd.f32 0.0, %v527
    %v529 = vpop.f32.mrf.mxu0
    %v530 = vadd.f32 0.0, %v529
    %531 = vmatmul.bf16.gmra.mxu0 %v431
    %v532 = vpop.f32.mrf.mxu0
    %v533 = vadd.f32 0.0, %v532
    %v534 = vpop.f32.mrf.mxu0
    %v535 = vadd.f32 0.0, %v534
    %536 = vmatmul.bf16.gmra.mxu0 %v432
    %v537 = vpop.f32.mrf.mxu0
    %v538 = vadd.f32 0.0, %v537
    %v539 = vpop.f32.mrf.mxu0
    %v540 = vadd.f32 0.0, %v539
    %541 = vmatmul.bf16.gmra.mxu0 %v433
    %v542 = vpop.f32.mrf.mxu0
    %v543 = vadd.f32 0.0, %v542
    %v544 = vpop.f32.mrf.mxu0
    %v545 = vadd.f32 0.0, %v544
    %546 = vdwg.mxu0
    %v547 = vpack.c.bf16 %v510, %v508
    %v548 = vpack.c.bf16 %v515, %v513
    %v549 = vpack.c.bf16 %v520, %v518
    %v550 = vpack.c.bf16 %v525, %v523
    %v551 = vpack.c.bf16 %v530, %v528
    %v552 = vpack.c.bf16 %v535, %v533
    %v553 = vpack.c.bf16 %v540, %v538
    %v554 = vpack.c.bf16 %v545, %v543
    %v555 = vld [vmem:[%s5] sm:$0x1]
    %v557 = vperm.slane %v555, 0
    %559 = vmatpush.bf16.msra.mxu0 %v554
    %560 = vmatpush.bf16.msra.mxu0 %v553
    %561 = vmatpush.bf16.msra.mxu0 %v552
    %562 = vmatpush.bf16.msra.mxu0 %v551
    %563 = vmatpush.bf16.msra.mxu0 %v550
    %564 = vmatpush.bf16.msra.mxu0 %v549
    %565 = vmatpush.bf16.msra.mxu0 %v548
    %566 = vmatpush.bf16.msra.mxu0 %v547
    %567 = vmatmul.bf16.gmra.mxu0 %v345
    %v568 = vpop.f32.mrf.mxu0
    %v569 = vadd.f32 %v557, %v568
    %v570 = vpop.f32.mrf.mxu0
    %v571 = vadd.f32 %v557, %v570
    %572 = vmatmul.bf16.gmra.mxu0 %v346
    %v573 = vpop.f32.mrf.mxu0
    %v574 = vadd.f32 %v557, %v573
    %v575 = vpop.f32.mrf.mxu0
    %v576 = vadd.f32 %v557, %v575
    %577 = vmatmul.bf16.gmra.mxu0 %v347
    %v578 = vpop.f32.mrf.mxu0
    %v579 = vadd.f32 %v557, %v578
    %v580 = vpop.f32.mrf.mxu0
    %v581 = vadd.f32 %v557, %v580
    %582 = vmatmul.bf16.gmra.mxu0 %v348
    %v583 = vpop.f32.mrf.mxu0
    %v584 = vadd.f32 %v557, %v583
    %v585 = vpop.f32.mrf.mxu0
    %v586 = vadd.f32 %v557, %v585
    %587 = vmatmul.bf16.gmra.mxu0 %v349
    %v588 = vpop.f32.mrf.mxu0
    %v589 = vadd.f32 %v557, %v588
    %v590 = vpop.f32.mrf.mxu0
    %v591 = vadd.f32 %v557, %v590
    %592 = vmatmul.bf16.gmra.mxu0 %v350
    %v593 = vpop.f32.mrf.mxu0
    %v594 = vadd.f32 %v557, %v593
    %v595 = vpop.f32.mrf.mxu0
    %v596 = vadd.f32 %v557, %v595
    %597 = vmatmul.bf16.gmra.mxu0 %v351
    %v598 = vpop.f32.mrf.mxu0
    %v599 = vadd.f32 %v557, %v598
    %v600 = vpop.f32.mrf.mxu0
    %v601 = vadd.f32 %v557, %v600
    %602 = vmatmul.bf16.gmra.mxu0 %v352
    %v603 = vpop.f32.mrf.mxu0
    %v604 = vadd.f32 %v557, %v603
    %v605 = vpop.f32.mrf.mxu0
    %v606 = vadd.f32 %v557, %v605
    %607 = vdwg.mxu0
    %v608 = vmax.f32 %v569, 0.0
    %v609 = vmax.f32 %v571, 0.0
    %v610 = vmax.f32 %v574, 0.0
    %v611 = vmax.f32 %v576, 0.0
    %v612 = vmax.f32 %v579, 0.0
    %v613 = vmax.f32 %v581, 0.0
    %v614 = vmax.f32 %v584, 0.0
    %v615 = vmax.f32 %v586, 0.0
    %v616 = vmax.f32 %v589, 0.0
    %v617 = vmax.f32 %v591, 0.0
    %v618 = vmax.f32 %v594, 0.0
    %v619 = vmax.f32 %v596, 0.0
    %v620 = vmax.f32 %v599, 0.0
    %v621 = vmax.f32 %v601, 0.0
    %v622 = vmax.f32 %v604, 0.0
    %v623 = vmax.f32 %v606, 0.0
    %v624 = vpack.c.bf16 %v609, %v608
    %v625 = vpack.c.bf16 %v611, %v610
    %v626 = vpack.c.bf16 %v613, %v612
    %v627 = vpack.c.bf16 %v615, %v614
    %v628 = vpack.c.bf16 %v617, %v616
    %v629 = vpack.c.bf16 %v619, %v618
    %v630 = vpack.c.bf16 %v621, %v620
    %v631 = vpack.c.bf16 %v623, %v622
    %v632 = vld [vmem:[#allocation10] sm:$0xf]
    %v633 = vld [vmem:[#allocation10 + $0x4] sm:$0xf]
    %v634 = vld [vmem:[#allocation10 + $0x8] sm:$0xf]
    %v635 = vld [vmem:[#allocation10 + $0xc] sm:$0xf]
    %v636 = vld [vmem:[#allocation10 + $0x10] sm:$0xf]
    %v637 = vld [vmem:[#allocation10 + $0x14] sm:$0xf]
    %v638 = vld [vmem:[#allocation10 + $0x18] sm:$0xf]
    %v639 = vld [vmem:[#allocation10 + $0x1c] sm:$0xf]
    %v640 = vld [vmem:[#allocation10 + $0x20] sm:$0xf]
    %v641 = vld [vmem:[#allocation10 + $0x24] sm:$0xf]
    %v642 = vld [vmem:[#allocation10 + $0x28] sm:$0xf]
    %v643 = vld [vmem:[#allocation10 + $0x2c] sm:$0xf]
    %v644 = vld [vmem:[#allocation10 + $0x30] sm:$0xf]
    %v645 = vld [vmem:[#allocation10 + $0x34] sm:$0xf]
    %v646 = vld [vmem:[#allocation10 + $0x38] sm:$0xf]
    %v647 = vld [vmem:[#allocation10 + $0x3c] sm:$0xf]
    %v648 = vld [vmem:[%s7] sm:$0x1]
    %v650 = vperm.slane %v648, 0
    %v668 = vunpack.c.l.b16 %v632
    %v669 = vunpack.c.l.b16 %v633
    %v670 = vunpack.c.l.b16 %v634
    %v671 = vunpack.c.l.b16 %v635
    %v672 = vunpack.c.l.b16 %v636
    %v673 = vunpack.c.l.b16 %v637
    %v674 = vunpack.c.l.b16 %v638
    %v675 = vunpack.c.l.b16 %v639
    %v676 = vunpack.c.l.b16 %v640
    %v677 = vunpack.c.l.b16 %v641
    %v678 = vunpack.c.l.b16 %v642
    %v679 = vunpack.c.l.b16 %v643
    %v680 = vunpack.c.l.b16 %v644
    %v681 = vunpack.c.l.b16 %v645
    %v682 = vunpack.c.l.b16 %v646
    %v683 = vunpack.c.l.b16 %v647
    %v684 = vpack.c.b16 %v669, %v668
    %v685 = vpack.c.b16 %v671, %v670
    %v686 = vpack.c.b16 %v673, %v672
    %v687 = vpack.c.b16 %v675, %v674
    %v688 = vpack.c.b16 %v677, %v676
    %v689 = vpack.c.b16 %v679, %v678
    %v690 = vpack.c.b16 %v681, %v680
    %v691 = vpack.c.b16 %v683, %v682
    %700 = vmatpush.bf16.msra.mxu0 %v691
    %701 = vmatpush.bf16.msra.mxu0 %v690
    %702 = vmatpush.bf16.msra.mxu0 %v689
    %703 = vmatpush.bf16.msra.mxu0 %v688
    %704 = vmatpush.bf16.msra.mxu0 %v687
    %705 = vmatpush.bf16.msra.mxu0 %v686
    %706 = vmatpush.bf16.msra.mxu0 %v685
    %707 = vmatpush.bf16.msra.mxu0 %v684
    %708 = vmatmul.bf16.gmra.mxu0 %v624
    %v709 = vpop.f32.mrf.mxu0
    %v710 = vadd.f32 %v650, %v709
    %v711 = vpop.f32.mrf.mxu0
    %v712 = vadd.f32 %v650, %v711
    %713 = vmatmul.bf16.gmra.mxu0 %v625
    %v714 = vpop.f32.mrf.mxu0
    %v715 = vadd.f32 %v650, %v714
    %v716 = vpop.f32.mrf.mxu0
    %v717 = vadd.f32 %v650, %v716
    %718 = vmatmul.bf16.gmra.mxu0 %v626
    %v719 = vpop.f32.mrf.mxu0
    %v720 = vadd.f32 %v650, %v719
    %v721 = vpop.f32.mrf.mxu0
    %v722 = vadd.f32 %v650, %v721
    %723 = vmatmul.bf16.gmra.mxu0 %v627
    %v724 = vpop.f32.mrf.mxu0
    %v725 = vadd.f32 %v650, %v724
    %v726 = vpop.f32.mrf.mxu0
    %v727 = vadd.f32 %v650, %v726
    %728 = vmatmul.bf16.gmra.mxu0 %v628
    %v729 = vpop.f32.mrf.mxu0
    %v730 = vadd.f32 %v650, %v729
    %v731 = vpop.f32.mrf.mxu0
    %v732 = vadd.f32 %v650, %v731
    %733 = vmatmul.bf16.gmra.mxu0 %v629
    %v734 = vpop.f32.mrf.mxu0
    %v735 = vadd.f32 %v650, %v734
    %v736 = vpop.f32.mrf.mxu0
    %v737 = vadd.f32 %v650, %v736
    %738 = vmatmul.bf16.gmra.mxu0 %v630
    %v739 = vpop.f32.mrf.mxu0
    %v740 = vadd.f32 %v650, %v739
    %v741 = vpop.f32.mrf.mxu0
    %v742 = vadd.f32 %v650, %v741
    %743 = vmatmul.bf16.gmra.mxu0 %v631
    %v744 = vpop.f32.mrf.mxu0
    %v745 = vadd.f32 %v650, %v744
    %v746 = vpop.f32.mrf.mxu0
    %v747 = vadd.f32 %v650, %v746
    %748 = vdwg.mxu0
    %749 = vmax.xlane.f32.xlu0 %v710
    %v750 = vpop.xlane.xlu0 %749
    %751 = vmax.xlane.f32.xlu0 %v712
    %v752 = vpop.xlane.xlu0 %751
    %753 = vmax.xlane.f32.xlu0 %v715
    %v754 = vpop.xlane.xlu0 %753
    %755 = vmax.xlane.f32.xlu0 %v717
    %v756 = vpop.xlane.xlu0 %755
    %757 = vmax.xlane.f32.xlu0 %v720
    %v758 = vpop.xlane.xlu0 %757
    %759 = vmax.xlane.f32.xlu0 %v722
    %v760 = vpop.xlane.xlu0 %759
    %761 = vmax.xlane.f32.xlu0 %v725
    %v762 = vpop.xlane.xlu0 %761
    %763 = vmax.xlane.f32.xlu0 %v727
    %v764 = vpop.xlane.xlu0 %763
    %765 = vmax.xlane.f32.xlu0 %v730
    %v766 = vpop.xlane.xlu0 %765
    %767 = vmax.xlane.f32.xlu0 %v732
    %v768 = vpop.xlane.xlu0 %767
    %769 = vmax.xlane.f32.xlu0 %v735
    %v770 = vpop.xlane.xlu0 %769
    %771 = vmax.xlane.f32.xlu0 %v737
    %v772 = vpop.xlane.xlu0 %771
    %773 = vmax.xlane.f32.xlu0 %v740
    %v774 = vpop.xlane.xlu0 %773
    %775 = vmax.xlane.f32.xlu0 %v742
    %v776 = vpop.xlane.xlu0 %775
    %777 = vmax.xlane.f32.xlu0 %v745
    %v778 = vpop.xlane.xlu0 %777
    %779 = vmax.xlane.f32.xlu0 %v747
    %v780 = vpop.xlane.xlu0 %779
    %v781 = vsub.f32 %v710, %v750
    %v782 = vsub.f32 %v712, %v752
    %v783 = vsub.f32 %v715, %v754
    %v784 = vsub.f32 %v717, %v756
    %v785 = vsub.f32 %v720, %v758
    %v786 = vsub.f32 %v722, %v760
    %v787 = vsub.f32 %v725, %v762
    %v788 = vsub.f32 %v727, %v764
    %v789 = vsub.f32 %v730, %v766
    %v790 = vsub.f32 %v732, %v768
    %v791 = vsub.f32 %v735, %v770
    %v792 = vsub.f32 %v737, %v772
    %v793 = vsub.f32 %v740, %v774
    %v794 = vsub.f32 %v742, %v776
    %v795 = vsub.f32 %v745, %v778
    %v796 = vsub.f32 %v747, %v780
    %v797 = vmul.f32 %v781, 1.442695
    %v798 = vpow.pop %v797
    %v799 = vmul.f32 %v782, 1.442695
    %v800 = vpow.pop %v799
    %v801 = vmul.f32 %v783, 1.442695
    %v802 = vpow.pop %v801
    %v803 = vmul.f32 %v784, 1.442695
    %v804 = vpow.pop %v803
    %v805 = vmul.f32 %v785, 1.442695
    %v806 = vpow.pop %v805
    %v807 = vmul.f32 %v786, 1.442695
    %v808 = vpow.pop %v807
    %v809 = vmul.f32 %v787, 1.442695
    %v810 = vpow.pop %v809
    %v811 = vmul.f32 %v788, 1.442695
    %v812 = vpow.pop %v811
    %v813 = vmul.f32 %v789, 1.442695
    %v814 = vpow.pop %v813
    %v815 = vmul.f32 %v790, 1.442695
    %v816 = vpow.pop %v815
    %v817 = vmul.f32 %v791, 1.442695
    %v818 = vpow.pop %v817
    %v819 = vmul.f32 %v792, 1.442695
    %v820 = vpow.pop %v819
    %v821 = vmul.f32 %v793, 1.442695
    %v822 = vpow.pop %v821
    %v823 = vmul.f32 %v794, 1.442695
    %v824 = vpow.pop %v823
    %v825 = vmul.f32 %v795, 1.442695
    %v826 = vpow.pop %v825
    %v827 = vmul.f32 %v796, 1.442695
    %v828 = vpow.pop %v827
    %829 = vadd.xlane.f32.xlu0 %v798
    %v830 = vpop.xlane.xlu0 %829
    %831 = vadd.xlane.f32.xlu0 %v800
    %v832 = vpop.xlane.xlu0 %831
    %833 = vadd.xlane.f32.xlu0 %v802
    %v834 = vpop.xlane.xlu0 %833
    %835 = vadd.xlane.f32.xlu0 %v804
    %v836 = vpop.xlane.xlu0 %835
    %837 = vadd.xlane.f32.xlu0 %v806
    %v838 = vpop.xlane.xlu0 %837
    %839 = vadd.xlane.f32.xlu0 %v808
    %v840 = vpop.xlane.xlu0 %839
    %841 = vadd.xlane.f32.xlu0 %v810
    %v842 = vpop.xlane.xlu0 %841
    %843 = vadd.xlane.f32.xlu0 %v812
    %v844 = vpop.xlane.xlu0 %843
    %845 = vadd.xlane.f32.xlu0 %v814
    %v846 = vpop.xlane.xlu0 %845
    %847 = vadd.xlane.f32.xlu0 %v816
    %v848 = vpop.xlane.xlu0 %847
    %849 = vadd.xlane.f32.xlu0 %v818
    %v850 = vpop.xlane.xlu0 %849
    %851 = vadd.xlane.f32.xlu0 %v820
    %v852 = vpop.xlane.xlu0 %851
    %853 = vadd.xlane.f32.xlu0 %v822
    %v854 = vpop.xlane.xlu0 %853
    %855 = vadd.xlane.f32.xlu0 %v824
    %v856 = vpop.xlane.xlu0 %855
    %857 = vadd.xlane.f32.xlu0 %v826
    %v858 = vpop.xlane.xlu0 %857
    %859 = vadd.xlane.f32.xlu0 %v828
    %v860 = vpop.xlane.xlu0 %859
    %v861 = vlog2.pop %v830
    %v862 = vmul.f32 %v861, 0.6931472
    %v863 = vlog2.pop %v832
    %v864 = vmul.f32 %v863, 0.6931472
    %v865 = vlog2.pop %v834
    %v866 = vmul.f32 %v865, 0.6931472
    %v867 = vlog2.pop %v836
    %v868 = vmul.f32 %v867, 0.6931472
    %v869 = vlog2.pop %v838
    %v870 = vmul.f32 %v869, 0.6931472
    %v871 = vlog2.pop %v840
    %v872 = vmul.f32 %v871, 0.6931472
    %v873 = vlog2.pop %v842
    %v874 = vmul.f32 %v873, 0.6931472
    %v875 = vlog2.pop %v844
    %v876 = vmul.f32 %v875, 0.6931472
    %v877 = vlog2.pop %v846
    %v878 = vmul.f32 %v877, 0.6931472
    %v879 = vlog2.pop %v848
    %v880 = vmul.f32 %v879, 0.6931472
    %v881 = vlog2.pop %v850
    %v882 = vmul.f32 %v881, 0.6931472
    %v883 = vlog2.pop %v852
    %v884 = vmul.f32 %v883, 0.6931472
    %v885 = vlog2.pop %v854
    %v886 = vmul.f32 %v885, 0.6931472
    %v887 = vlog2.pop %v856
    %v888 = vmul.f32 %v887, 0.6931472
    %v889 = vlog2.pop %v858
    %v890 = vmul.f32 %v889, 0.6931472
    %v891 = vlog2.pop %v860
    %v892 = vmul.f32 %v891, 0.6931472
    %v893 = vadd.f32 %v862, %v750
    %v894 = vadd.f32 %v864, %v752
    %v895 = vadd.f32 %v866, %v754
    %v896 = vadd.f32 %v868, %v756
    %v897 = vadd.f32 %v870, %v758
    %v898 = vadd.f32 %v872, %v760
    %v899 = vadd.f32 %v874, %v762
    %v900 = vadd.f32 %v876, %v764
    %v901 = vadd.f32 %v878, %v766
    %v902 = vadd.f32 %v880, %v768
    %v903 = vadd.f32 %v882, %v770
    %v904 = vadd.f32 %v884, %v772
    %v905 = vadd.f32 %v886, %v774
    %v906 = vadd.f32 %v888, %v776
    %v907 = vadd.f32 %v890, %v778
    %v908 = vadd.f32 %v892, %v780
    %v909 = vsub.f32 %v710, %v893
    %v910 = vsub.f32 %v712, %v894
    %v911 = vsub.f32 %v715, %v895
    %v912 = vsub.f32 %v717, %v896
    %v913 = vsub.f32 %v720, %v897
    %v914 = vsub.f32 %v722, %v898
    %v915 = vsub.f32 %v725, %v899
    %v916 = vsub.f32 %v727, %v900
    %v917 = vsub.f32 %v730, %v901
    %v918 = vsub.f32 %v732, %v902
    %v919 = vsub.f32 %v735, %v903
    %v920 = vsub.f32 %v737, %v904
    %v921 = vsub.f32 %v740, %v905
    %v922 = vsub.f32 %v742, %v906
    %v923 = vsub.f32 %v745, %v907
    %v924 = vsub.f32 %v747, %v908
    %925 = vst [vmem:[#allocation11] sm:$0xff] %v909
    %926 = vst [vmem:[#allocation11 + $0x8] sm:$0xff] %v910
    %927 = vst [vmem:[#allocation11 + $0x10] sm:$0xff] %v911
    %928 = vst [vmem:[#allocation11 + $0x18] sm:$0xff] %v912
    %929 = vst [vmem:[#allocation11 + $0x20] sm:$0xff] %v913
    %930 = vst [vmem:[#allocation11 + $0x28] sm:$0xff] %v914
    %931 = vst [vmem:[#allocation11 + $0x30] sm:$0xff] %v915
    %932 = vst [vmem:[#allocation11 + $0x38] sm:$0xff] %v916
    %933 = vst [vmem:[#allocation11 + $0x40] sm:$0xff] %v917
    %934 = vst [vmem:[#allocation11 + $0x48] sm:$0xff] %v918
    %935 = vst [vmem:[#allocation11 + $0x50] sm:$0xff] %v919
    %936 = vst [vmem:[#allocation11 + $0x58] sm:$0xff] %v920
    %937 = vst [vmem:[#allocation11 + $0x60] sm:$0xff] %v921
    %938 = vst [vmem:[#allocation11 + $0x68] sm:$0xff] %v922
    %939 = vst [vmem:[#allocation11 + $0x70] sm:$0xff] %v923
    %940 = vst [vmem:[#allocation11 + $0x78] sm:$0xff] %v924
    // Predicated region
    $region54: #{tpu_custom_call.1} parent=1 // pred_check
      _
    $region55: #{tpu_custom_call.1} parent=1 // pred_check_branch
      %942 = sbr.rel (0) target = $region57
    $region56: #{tpu_custom_call.1} parent=1 // pred_region
      %944 = vsyncadd [#allocation4], 0
      %s945 = sshll.u32 [#allocation11], 4
      %s946 = int_to_ptr.vmem [resolvable:$true] %s945
      %s947 = sshll.u32 %s8, 4
      %s948 = int_to_ptr.hbm [resolvable:$true] %s947
      %953 = dma.vmem_to_hbm [thread:$0]  %s946, 2048, %s948, [#allocation4], 128, 128, 8
    $region57: #{tpu_custom_call.1} parent=1 // pred_fallthru
      _
    // Predicated region
    $region58: #{tpu_custom_call.1} parent=1 // pred_check
      _
    $region59: #{tpu_custom_call.1} parent=1 // pred_check_branch
      %955 = sbr.rel (0) target = $region61
    $region60: #{tpu_custom_call.1} parent=1 // pred_region
      %957 = dma.done [#allocation4], 2048
    $region61: #{tpu_custom_call.1} parent=1 // pred_fallthru
      _
    %958 = vsyncpa [#allocation3], 1
    %959 = vsyncpa [#allocation6], 1
    %960 = vsyncpa [#allocation9], 1
    %961 = vsyncpa [#allocation4], 1

</llo_original>
